<compile_context>
chip_gen: v7x
topology: tpu7x:2x2x1
jax: 0.10.0
libtpu: 0.0.40
codegen_flags: <defaults>
</compile_context>

<pallas_src>
import math

import jax
import jax.numpy as jnp
from jax.experimental import pallas as pl
from jax.experimental.pallas import tpu as pltpu


def _lcm(a, b):
    return a * b // math.gcd(a, b)


def _block_diag(m):
    """(n_blk, Tb, P, Q) -> (n_blk, Tb*P, Tb*Q) with m[:, t] on diagonal block t."""
    n_blk, tb, p, q = m.shape
    eye = jnp.eye(tb, dtype=m.dtype)
    out = jnp.einsum('btpq,ts->btpsq', m, eye)
    return out.reshape(n_blk, tb * p, tb * q)


def _block_kernel(a_ref, x_ref, w_ref, b_ref, o_ref):
    # a_ref: (N, Tb*N)             A_t concatenated along lanes
    # x_ref: (Tb*N, Tb*F)          block_diag(x_t)
    # w_ref: (Tb*F, Tb*(F+out_F))  [ block_diag(W_t) | block_diag(Wd_t^T) ]
    # b_ref: (1, Tb*F)             per-step GCN bias, broadcast over nodes
    # o_ref: (N, Tb*out_F)         lane-dense packed output
    tbf = w_ref.shape[0]  # Tb*F (static)

    # (A_t @ x_t) for all t in one 256-deep contraction.
    ax = jnp.dot(a_ref[...], x_ref[...], preferred_element_type=jnp.float32)
    # ... @ W_t, plus bias broadcast over nodes (full-lane VPU add).
    gcn = jnp.dot(ax, w_ref[:, :tbf], preferred_element_type=jnp.float32) + b_ref[...]
    # LeakyReLU(negative_slope=0.01) as a single vmax.
    h = jnp.maximum(gcn, 0.01 * gcn)
    # ... @ Wd_t^T, produced directly in the lane-dense output layout.
    out = jnp.dot(h, w_ref[:, tbf:], preferred_element_type=jnp.float32)
    # Single unmasked full-lane store.
    o_ref[...] = out.astype(o_ref.dtype)


def temporal_deep_autoreg(x_seq, A, W, b, Wd, *, time_block=None):
    """x_seq: (T, N, F); A: (T, N, N); W: (T, F, F); b: (T, F); Wd: (T, out_F, F).

    Returns the stacked (T, N, out_F) output (use list(out) for the module's
    List[FloatTensor] API).
    """
    T, N, F = x_seq.shape
    out_F = Wd.shape[1]

    if time_block is None:
        # Smallest Tb making both the hidden (Tb*F) and output (Tb*out_F) widths
        # multiples of 128 lanes -> unmasked stores + full-lane VPU/MXU work.
        need = _lcm(128 // math.gcd(128, F), 128 // math.gcd(128, out_F))
        # Lane-unfriendly F/out_F: fall back to a small block (still legal,
        # blocks equal the full array dims; stores become partially masked).
        time_block = need if need <= 64 else 8
    Tb = int(time_block)

    n_blk = pl.cdiv(T, Tb)
    T_pad = n_blk * Tb
    if T_pad != T:
        # Zero-padded tail time steps produce exact zeros and are trimmed below.
        pad = T_pad - T
        pad3 = ((0, pad), (0, 0), (0, 0))
        x_seq = jnp.pad(x_seq, pad3)
        A = jnp.pad(A, pad3)
        W = jnp.pad(W, pad3)
        Wd = jnp.pad(Wd, pad3)
        b = jnp.pad(b, ((0, pad), (0, 0)))

    # --- wrapper-side lane-dense packing (layout plumbing only) ------------
    # A_hcat[i, n, t*N + m] = A_{i*Tb+t}[n, m]
    A_hcat = A.reshape(n_blk, Tb, N, N).transpose(0, 2, 1, 3).reshape(n_blk, N, Tb * N)
    # block_diag(x_t): (n_blk, Tb*N, Tb*F)
    X_bd = _block_diag(x_seq.reshape(n_blk, Tb, N, F))
    # [ block_diag(W_t) | block_diag(Wd_t^T) ]: one operand -> one DMA per step.
    W_bd = _block_diag(W.reshape(n_blk, Tb, F, F))
    WdT_bd = _block_diag(Wd.transpose(0, 2, 1).reshape(n_blk, Tb, F, out_F))
    W_cat = jnp.concatenate([W_bd, WdT_bd], axis=-1)          # (n_blk, Tb*F, Tb*(F+out_F))
    b_pk = b.reshape(n_blk, 1, Tb * F)

    packed = pl.pallas_call(
        _block_kernel,
        out_shape=jax.ShapeDtypeStruct((n_blk, N, Tb * out_F), jnp.float32),
        grid_spec=pltpu.PrefetchScalarGridSpec(
            num_scalar_prefetch=0,
            grid=(n_blk,),
            in_specs=[
                pl.BlockSpec((None, N, Tb * N), lambda i: (i, 0, 0)),               # A_hcat
                pl.BlockSpec((None, Tb * N, Tb * F), lambda i: (i, 0, 0)),           # X_bd
                pl.BlockSpec((None, Tb * F, Tb * (F + out_F)), lambda i: (i, 0, 0)),  # W|WdT
                pl.BlockSpec((None, 1, Tb * F), lambda i: (i, 0, 0)),                # bias
            ],
            out_specs=pl.BlockSpec((None, N, Tb * out_F), lambda i: (i, 0, 0)),
        ),
        compiler_params=pltpu.CompilerParams(
            dimension_semantics=("parallel",),
        ),
    )(A_hcat, X_bd, W_cat, b_pk)

    # Unpack the lane-dense slab (n_blk, N, Tb*out_F) -> (T, N, out_F).
    out = packed.reshape(n_blk, N, Tb, out_F).transpose(0, 2, 1, 3).reshape(T_pad, N, out_F)
    return out[:T]


def _reference(x_seq, A, W, b, Wd):
    outs = []
    for t in range(x_seq.shape[0]):
        gcn = A[t] @ (x_seq[t] @ W[t]) + b[t][None, :]
        h = jnp.where(gcn > 0, gcn, 0.01 * gcn)
        outs.append(h @ Wd[t].T)
    return jnp.stack(outs)


if __name__ == "__main__":
    # Small shapes consistent with the module: T graphs, each with N nodes and
    # F node features; out_features == in_features by default.
    # T=24 with Tb=16 exercises both the multi-step grid and the T % Tb padding path.
    T, N, F, out_F = 24, 16, 8, 8

    key = jax.random.PRNGKey(0)
    k_x, k_a, k_w, k_b, k_wd = jax.random.split(key, 5)

    x_seq = jax.random.normal(k_x, (T, N, F), dtype=jnp.float32)

    # init_A='trunc_normal' for the adjacency matrices (deterministic synthetic init).
    A = jax.random.truncated_normal(k_a, -2.0, 2.0, (T, N, N), dtype=jnp.float32) * 0.1

    # nn.init.xavier_uniform_ for W (square, F x F).
    lim_w = (6.0 / (F + F)) ** 0.5
    W = jax.random.uniform(k_w, (T, F, F), minval=-lim_w, maxval=lim_w, dtype=jnp.float32)

    # GCNConv bias (deterministic synthetic init).
    b = 0.01 * jax.random.normal(k_b, (T, F), dtype=jnp.float32)

    # nn.Linear(in_features, out_features, bias=False) weights, shape (out, in).
    lim_d = (1.0 / F) ** 0.5
    Wd = jax.random.uniform(k_wd, (T, out_F, F), minval=-lim_d, maxval=lim_d, dtype=jnp.float32)

    out = temporal_deep_autoreg(x_seq, A, W, b, Wd)
    out = jax.block_until_ready(out)

    ref = _reference(x_seq, A, W, b, Wd)
    assert out.shape == (T, N, out_F)
    assert jnp.allclose(out, ref, atol=1e-4, rtol=1e-4)

    print("KERNEL_OK")
</pallas_src>

<mosaic_0001>
module attributes {stable_mosaic.version = 11 : i64} {
  func.func @_block_kernel(%arg0: i32, %arg1: memref<1x16x256xf32, #tpu.memory_space<vmem>>, %arg2: memref<1x256x128xf32, #tpu.memory_space<vmem>>, %arg3: memref<1x128x256xf32, #tpu.memory_space<vmem>>, %arg4: memref<1x1x128xf32, #tpu.memory_space<vmem>>, %arg5: memref<1x16x128xf32, #tpu.memory_space<vmem>>) attributes {dimension_semantics = [#tpu.dimension_semantics<parallel>], iteration_bounds = array<i64: 2>, scalar_prefetch = 0 : i64, scratch_operands = 0 : i64, tpu.core_type = #tpu.core_type<tc>, window_params = [{transform_indices = @transform_0, window_bounds = array<i64: 1, 16, 256>}, {transform_indices = @transform_1, window_bounds = array<i64: 1, 256, 128>}, {transform_indices = @transform_2, window_bounds = array<i64: 1, 128, 256>}, {transform_indices = @transform_3, window_bounds = array<i64: 1, 1, 128>}, {transform_indices = @transform_4, window_bounds = array<i64: 1, 16, 128>}]} {
    %c0 = arith.constant 0 : index
    %c0_0 = arith.constant 0 : index
    %c0_1 = arith.constant 0 : index
    %0 = vector.load %arg1[%c0, %c0_0, %c0_1] : memref<1x16x256xf32, #tpu.memory_space<vmem>>, vector<1x16x256xf32>
    %1 = vector.shape_cast %0 : vector<1x16x256xf32> to vector<16x256xf32>
    %c0_2 = arith.constant 0 : index
    %c0_3 = arith.constant 0 : index
    %c0_4 = arith.constant 0 : index
    %2 = vector.load %arg2[%c0_2, %c0_3, %c0_4] : memref<1x256x128xf32, #tpu.memory_space<vmem>>, vector<1x256x128xf32>
    %3 = vector.shape_cast %2 : vector<1x256x128xf32> to vector<256x128xf32>
    %cst = arith.constant dense<0.000000e+00> : vector<16x128xf32>
    %4 = tpu.matmul %1, %3, %cst {dimension_numbers = #tpu.dot_dimension_numbers<[1], [0], [0], [1], [0, 0, 1, 1], [], []>} : vector<16x256xf32>, vector<256x128xf32>, vector<16x128xf32> -> vector<16x128xf32>
    %c0_5 = arith.constant 0 : index
    %c0_6 = arith.constant 0 : index
    %c0_7 = arith.constant 0 : index
    %5 = vector.load %arg3[%c0_5, %c0_6, %c0_7] : memref<1x128x256xf32, #tpu.memory_space<vmem>>, vector<1x128x128xf32>
    %6 = vector.shape_cast %5 : vector<1x128x128xf32> to vector<128x128xf32>
    %cst_8 = arith.constant dense<0.000000e+00> : vector<16x128xf32>
    %7 = tpu.matmul %4, %6, %cst_8 {dimension_numbers = #tpu.dot_dimension_numbers<[1], [0], [0], [1], [0, 0, 1, 1], [], []>} : vector<16x128xf32>, vector<128x128xf32>, vector<16x128xf32> -> vector<16x128xf32>
    %c0_9 = arith.constant 0 : index
    %c0_10 = arith.constant 0 : index
    %c0_11 = arith.constant 0 : index
    %8 = vector.load %arg4[%c0_9, %c0_10, %c0_11] : memref<1x1x128xf32, #tpu.memory_space<vmem>>, vector<1x1x128xf32>
    %9 = vector.shape_cast %8 : vector<1x1x128xf32> to vector<1x128xf32>
    %10 = vector.broadcast %9 : vector<1x128xf32> to vector<16x128xf32>
    %11 = arith.addf %7, %10 : vector<16x128xf32>
    %cst_12 = arith.constant 0.00999999977 : f32
    %12 = vector.broadcast %cst_12 : f32 to vector<16x128xf32>
    %13 = arith.mulf %12, %11 : vector<16x128xf32>
    %14 = arith.maximumf %11, %13 : vector<16x128xf32>
    %c0_13 = arith.constant 0 : index
    %c0_14 = arith.constant 0 : index
    %c128 = arith.constant 128 : index
    %15 = vector.load %arg3[%c0_13, %c0_14, %c128] : memref<1x128x256xf32, #tpu.memory_space<vmem>>, vector<1x128x128xf32>
    %16 = vector.shape_cast %15 : vector<1x128x128xf32> to vector<128x128xf32>
    %cst_15 = arith.constant dense<0.000000e+00> : vector<16x128xf32>
    %17 = tpu.matmul %14, %16, %cst_15 {dimension_numbers = #tpu.dot_dimension_numbers<[1], [0], [0], [1], [0, 0, 1, 1], [], []>} : vector<16x128xf32>, vector<128x128xf32>, vector<16x128xf32> -> vector<16x128xf32>
    %c0_16 = arith.constant 0 : index
    %c0_17 = arith.constant 0 : index
    %c0_18 = arith.constant 0 : index
    %18 = vector.load %arg5[%c0_16, %c0_17, %c0_18] : memref<1x16x128xf32, #tpu.memory_space<vmem>>, vector<1x16x128xf32>
    %19 = vector.shape_cast %18 : vector<1x16x128xf32> to vector<16x128xf32>
    %20 = vector.shape_cast %17 : vector<16x128xf32> to vector<1x16x128xf32>
    tpu.vector_store %arg5[%c0_16, %c0_17, %c0_18], %20 {strides = array<i32>} : memref<1x16x128xf32, #tpu.memory_space<vmem>>, vector<1x16x128xf32>,
    return
  }
  func.func @transform_0(%arg0: i32) -> (i32, i32, i32) {
    %c0_i32 = arith.constant 0 : i32
    %c0_i32_0 = arith.constant 0 : i32
    %c0_i32_1 = arith.constant 0 : i32
    return %arg0, %c0_i32, %c0_i32_0 : i32, i32, i32
  }
  func.func @transform_1(%arg0: i32) -> (i32, i32, i32) {
    %c0_i32 = arith.constant 0 : i32
    %c0_i32_0 = arith.constant 0 : i32
    %c0_i32_1 = arith.constant 0 : i32
    return %arg0, %c0_i32, %c0_i32_0 : i32, i32, i32
  }
  func.func @transform_2(%arg0: i32) -> (i32, i32, i32) {
    %c0_i32 = arith.constant 0 : i32
    %c0_i32_0 = arith.constant 0 : i32
    %c0_i32_1 = arith.constant 0 : i32
    return %arg0, %c0_i32, %c0_i32_0 : i32, i32, i32
  }
  func.func @transform_3(%arg0: i32) -> (i32, i32, i32) {
    %c0_i32 = arith.constant 0 : i32
    %c0_i32_0 = arith.constant 0 : i32
    %c0_i32_1 = arith.constant 0 : i32
    return %arg0, %c0_i32, %c0_i32_0 : i32, i32, i32
  }
  func.func @transform_4(%arg0: i32) -> (i32, i32, i32) {
    %c0_i32 = arith.constant 0 : i32
    %c0_i32_0 = arith.constant 0 : i32
    %c0_i32_1 = arith.constant 0 : i32
    return %arg0, %c0_i32, %c0_i32_0 : i32, i32, i32
  }
}

</mosaic_0001>

<llo_original>
// kernel: tpu_custom_call.1
$region0: #{tpu_custom_call.1}
  #allocation0 [shape = 'u32[]', space=smem, size = 0x4, offset = 0x4, fixed_abs, tag = 'smem constant byte address 0x4 - core index']
  #allocation1 [shape = 'u32[144,128]{1,0:T(1,128)}', space=vmem, size = 0x12000, scoped, tag = 'internal scratch']
  %s0 = inlined_call_operand.hbm [shape: f32[2,16,256], index: 0, kind: input, shape index: {}]
  %s1 = inlined_call_operand.hbm [shape: f32[2,256,128], index: 1, kind: input, shape index: {}]
  %s2 = inlined_call_operand.hbm [shape: f32[2,128,256], index: 2, kind: input, shape index: {}]
  %s3 = inlined_call_operand.vmem [shape: f32[2,1,128], index: 3, kind: input, shape index: {}]
  %s4 = inlined_call_operand.hbm [shape: f32[2,16,128], index: 4, kind: output, shape index: {}]
  %s5 = sld [smem:[#allocation0]]
  $region61: #{tpu_custom_call.1} parent=0
    _
  %s7 = ssub.s32 1, %s5
  %s8 = scalar_select 0, %s7, %s5
  $region1: #{tpu_custom_call.1} parent=0
    #allocation2 [shape = 'u8[32768]{0}', space=vmem, size = 0x8000, scoped, tag = 'input window, operand 0']
    #allocation3 [shape = 's32[2]{0}', space=sflag, size = 0x8, scoped, tag = 'scoped memory for tpu_custom_call.1']
    #allocation4 [shape = 's32[2]{0}', space=sflag, size = 0x8, scoped, tag = 'scoped memory for tpu_custom_call.1']
    #allocation5 [shape = 'u8[262144]{0}', space=vmem, size = 0x40000, scoped, tag = 'input window, operand 1']
    #allocation6 [shape = 's32[2]{0}', space=sflag, size = 0x8, scoped, tag = 'scoped memory for tpu_custom_call.1']
    #allocation7 [shape = 'u8[262144]{0}', space=vmem, size = 0x40000, scoped, tag = 'input window, operand 2']
    #allocation8 [shape = 'u8[16384]{0}', space=vmem, size = 0x4000, scoped, tag = 'output window, operand 0']
    %9 = vsyncpa [#allocation3], 0
    %s10 = scalar_lea.sflag [#allocation3], 1
    %11 = vsyncpa %s10, 0
    %12 = vsyncpa [#allocation6], 0
    %s13 = scalar_lea.sflag [#allocation6], 1
    %14 = vsyncpa %s13, 0
    %15 = vsyncpa [#allocation4], 0
    %s16 = scalar_lea.sflag [#allocation4], 1
    %17 = vsyncpa %s16, 0
    loop: start=0, step=1, limit=4
    $region2: #{tpu_custom_call.1} parent=1 // loop_pre_header
      _
    $region3: #{tpu_custom_call.1} parent=1 // loop_header
      %s19 = sphi 0, %s23
      %p20 = scmp.ge.s32.totalorder %s19, 4
      %s29 = sphi 0, %s31
      %s32 = sphi 0, %s29
      %s33 = sphi 0, %s32
      %s49 = sphi 0, %s33
      %s55 = sphi 0, %s57
      %s58 = sphi 0, %s55
      %s59 = sphi 0, %s58
      %s75 = sphi 0, %s59
      %s81 = sphi 0, %s83
      %s84 = sphi 0, %s81
      %s85 = sphi 0, %s84
      %s101 = sphi 0, %s85
      %s107 = sphi 0, %s109
      %s110 = sphi 0, %s107
      %s111 = sphi 0, %s110
      %s127 = sphi 0, %s111
      %s133 = sphi 0, %s135
      %s136 = sphi 0, %s133
      %s137 = sphi 0, %s136
      %s153 = sphi 0, %s137
    $region4: #{tpu_custom_call.1} parent=1 // loop_header_branch
      %22 = sbr.rel (%p20) target = $region8
    $region5: #{tpu_custom_call.1} parent=1 // loop_body
      %s24 = ssub.s32 %s19, 1
      %s25 = ssub.s32 %s19, 2
      %s26 = sadd.s32 %s19, 1
      %s27 = ssub.s32 %s19, %s26
      %p28 = scmp.eq.s32.totalorder %s27, 0
      %s30 = sadd.s32 %s29, 1
      %s31 = scalar_select %p28, %s29, %s30
      %p34 = pneg %p28
      %p35 = scmp.eq.s32.totalorder %s19, 1
      %p36 = por %p34, %p35
      %p37 = scmp.ne.s32.totalorder %s29, %s32
      %p38 = scmp.eq.s32.totalorder %s19, 0
      %p39 = por %p37, %p38
      %p40 = scmp.ne.s32.totalorder %s29, %s32
      %p41 = scmp.eq.s32.totalorder %s24, 1
      %p42 = por %p40, %p41
      %p43 = scmp.ne.s32.totalorder %s32, %s33
      %p44 = scmp.eq.s32.totalorder %s24, 0
      %p45 = por %p43, %p44
      %p46 = scmp.ne.s32.totalorder %s32, %s33
      %p47 = scmp.eq.s32.totalorder %s25, 1
      %p48 = por %p46, %p47
      %p50 = scmp.ne.s32.totalorder %s33, %s49
      %p51 = scmp.eq.s32.totalorder %s25, 0
      %p52 = por %p50, %p51
      %s53 = ssub.s32 %s19, %s26
      %p54 = scmp.eq.s32.totalorder %s53, 0
      %s56 = sadd.s32 %s55, 1
      %s57 = scalar_select %p54, %s55, %s56
      %p60 = pneg %p54
      %p61 = scmp.eq.s32.totalorder %s19, 1
      %p62 = por %p60, %p61
      %p63 = scmp.ne.s32.totalorder %s55, %s58
      %p64 = scmp.eq.s32.totalorder %s19, 0
      %p65 = por %p63, %p64
      %p66 = scmp.ne.s32.totalorder %s55, %s58
      %p67 = scmp.eq.s32.totalorder %s24, 1
      %p68 = por %p66, %p67
      %p69 = scmp.ne.s32.totalorder %s58, %s59
      %p70 = scmp.eq.s32.totalorder %s24, 0
      %p71 = por %p69, %p70
      %p72 = scmp.ne.s32.totalorder %s58, %s59
      %p73 = scmp.eq.s32.totalorder %s25, 1
      %p74 = por %p72, %p73
      %p76 = scmp.ne.s32.totalorder %s59, %s75
      %p77 = scmp.eq.s32.totalorder %s25, 0
      %p78 = por %p76, %p77
      %s79 = ssub.s32 %s19, %s26
      %p80 = scmp.eq.s32.totalorder %s79, 0
      %s82 = sadd.s32 %s81, 1
      %s83 = scalar_select %p80, %s81, %s82
      %p86 = pneg %p80
      %p87 = scmp.eq.s32.totalorder %s19, 1
      %p88 = por %p86, %p87
      %p89 = scmp.ne.s32.totalorder %s81, %s84
      %p90 = scmp.eq.s32.totalorder %s19, 0
      %p91 = por %p89, %p90
      %p92 = scmp.ne.s32.totalorder %s81, %s84
      %p93 = scmp.eq.s32.totalorder %s24, 1
      %p94 = por %p92, %p93
      %p95 = scmp.ne.s32.totalorder %s84, %s85
      %p96 = scmp.eq.s32.totalorder %s24, 0
      %p97 = por %p95, %p96
      %p98 = scmp.ne.s32.totalorder %s84, %s85
      %p99 = scmp.eq.s32.totalorder %s25, 1
      %p100 = por %p98, %p99
      %p102 = scmp.ne.s32.totalorder %s85, %s101
      %p103 = scmp.eq.s32.totalorder %s25, 0
      %p104 = por %p102, %p103
      %s105 = ssub.s32 %s19, %s26
      %p106 = scmp.eq.s32.totalorder %s105, 0
      %s108 = sadd.s32 %s107, 1
      %s109 = scalar_select %p106, %s107, %s108
      %p112 = pneg %p106
      %p113 = scmp.eq.s32.totalorder %s19, 1
      %p114 = por %p112, %p113
      %p115 = scmp.ne.s32.totalorder %s107, %s110
      %p116 = scmp.eq.s32.totalorder %s19, 0
      %p117 = por %p115, %p116
      %p118 = scmp.ne.s32.totalorder %s107, %s110
      %p119 = scmp.eq.s32.totalorder %s24, 1
      %p120 = por %p118, %p119
      %p121 = scmp.ne.s32.totalorder %s110, %s111
      %p122 = scmp.eq.s32.totalorder %s24, 0
      %p123 = por %p121, %p122
      %p124 = scmp.ne.s32.totalorder %s110, %s111
      %p125 = scmp.eq.s32.totalorder %s25, 1
      %p126 = por %p124, %p125
      %p128 = scmp.ne.s32.totalorder %s111, %s127
      %p129 = scmp.eq.s32.totalorder %s25, 0
      %p130 = por %p128, %p129
      %s131 = ssub.s32 %s19, %s26
      %p132 = scmp.eq.s32.totalorder %s131, 0
      %s134 = sadd.s32 %s133, 1
      %s135 = scalar_select %p132, %s133, %s134
      %p138 = pneg %p132
      %p139 = scmp.eq.s32.totalorder %s19, 1
      %p140 = por %p138, %p139
      %p141 = scmp.ne.s32.totalorder %s133, %s136
      %p142 = scmp.eq.s32.totalorder %s19, 0
      %p143 = por %p141, %p142
      %p144 = scmp.ne.s32.totalorder %s133, %s136
      %p145 = scmp.eq.s32.totalorder %s24, 1
      %p146 = por %p144, %p145
      %p147 = scmp.ne.s32.totalorder %s136, %s137
      %p148 = scmp.eq.s32.totalorder %s24, 0
      %p149 = por %p147, %p148
      %p150 = scmp.ne.s32.totalorder %s136, %s137
      %p151 = scmp.eq.s32.totalorder %s25, 1
      %p152 = por %p150, %p151
      %p154 = scmp.ne.s32.totalorder %s137, %s153
      %p155 = scmp.eq.s32.totalorder %s25, 0
      %p156 = por %p154, %p155
      %p157 = scmp.le.s32.totalorder 1, %s19
      %p158 = scmp.lt.s32.totalorder %s19, 3
      %p159 = pnand %p157, %p158
      %p160 = pneg %p159
      // Predicated region
      $region9: #{tpu_custom_call.1} parent=5 // pred_check
        _
      $region10: #{tpu_custom_call.1} parent=5 // pred_check_branch
        %162 = sbr.rel (%p159) target = $region12
      $region11: #{tpu_custom_call.1} parent=5 // pred_region
        %s163 = ssub.s32 %s19, 1
      $region12: #{tpu_custom_call.1} parent=5 // pred_fallthru
        _
      %p164 = scmp.lt.s32.totalorder %s19, 2
      // Predicated region
      $region13: #{tpu_custom_call.1} parent=5 // pred_check
        %p165 = pneg %p164
      $region14: #{tpu_custom_call.1} parent=5 // pred_check_branch
        %167 = sbr.rel (%p165) target = $region16
      $region15: #{tpu_custom_call.1} parent=5 // pred_region
        // Predicated region
        $region17: #{tpu_custom_call.1} parent=15 // pred_check
          %p168 = pneg %p39
        $region18: #{tpu_custom_call.1} parent=15 // pred_check_branch
          %170 = sbr.rel (%p168) target = $region20
        $region19: #{tpu_custom_call.1} parent=15 // pred_region
          %s171 = sand.u32 %s29, 1
          %s172 = scalar_lea.sflag [#allocation3], %s171
          %s173 = sand.u32 %s29, 1
          %s174 = smul.addr %s173, 32
          %s175 = scalar_lea.vmem [#allocation2], %s174
          %s177 = ssub.s32 512, 512
          %178 = vsyncadd %s172, %s177
          %s179 = smul.addr %s19, 4
          %s180 = smul.addr %s179, 128
          %s181 = scalar_lea.hbm %s0, %s180
          %s182 = sshll.u32 %s175, 4
          %s183 = int_to_ptr.vmem [resolvable:$true] %s182
          %188 = dma.hbm_to_vmem [thread:$0]  %s181, 512, %s183, %s172, 256, 256, 16
        $region20: #{tpu_custom_call.1} parent=15 // pred_fallthru
          _
        // Predicated region
        $region21: #{tpu_custom_call.1} parent=15 // pred_check
          %p189 = pneg %p65
        $region22: #{tpu_custom_call.1} parent=15 // pred_check_branch
          %191 = sbr.rel (%p189) target = $region24
        $region23: #{tpu_custom_call.1} parent=15 // pred_region
          %s192 = sand.u32 %s19, 1
          %s193 = scalar_lea.sflag [#allocation6], %s192
          %s194 = sand.u32 %s55, 1
          %s195 = smul.addr %s194, 256
          %s196 = scalar_lea.vmem [#allocation5], %s195
          %s198 = ssub.s32 4096, 4096
          %199 = vsyncadd %s193, %s198
          %s200 = smul.addr %s19, 32
          %s201 = smul.addr %s200, 128
          %s202 = scalar_lea.hbm %s1, %s201
          %s203 = sshll.u32 %s196, 4
          %s204 = int_to_ptr.vmem [resolvable:$true] %s203
          %209 = dma.hbm_to_vmem [thread:$0]  %s202, 4096, %s204, %s193, 128, 128, 8
        $region24: #{tpu_custom_call.1} parent=15 // pred_fallthru
          _
        // Predicated region
        $region25: #{tpu_custom_call.1} parent=15 // pred_check
          %p210 = pneg %p91
        $region26: #{tpu_custom_call.1} parent=15 // pred_check_branch
          %212 = sbr.rel (%p210) target = $region28
        $region27: #{tpu_custom_call.1} parent=15 // pred_region
          %s213 = sand.u32 %s19, 1
          %s214 = scalar_lea.sflag [#allocation6], %s213
          %s215 = sand.u32 %s81, 1
          %s216 = smul.addr %s215, 256
          %s217 = scalar_lea.vmem [#allocation7], %s216
          %s219 = ssub.s32 4096, 4096
          %220 = vsyncadd %s214, %s219
          %s221 = smul.addr %s19, 32
          %s222 = smul.addr %s221, 128
          %s223 = scalar_lea.hbm %s2, %s222
          %s224 = sshll.u32 %s217, 4
          %s225 = int_to_ptr.vmem [resolvable:$true] %s224
          %230 = dma.hbm_to_vmem [thread:$0]  %s223, 4096, %s225, %s214, 256, 256, 16
        $region28: #{tpu_custom_call.1} parent=15 // pred_fallthru
          _
        // Predicated region
        $region29: #{tpu_custom_call.1} parent=15 // pred_check
          %p231 = pneg %p117
        $region30: #{tpu_custom_call.1} parent=15 // pred_check_branch
          %233 = sbr.rel (%p231) target = $region32
        $region31: #{tpu_custom_call.1} parent=15 // pred_region
          %p234 = scmp.lt.s32.totalorder %s19, 1
          %s235 = scalar_select %p234, %s19, 1
          %s236 = scalar_lea.vmem %s3, %s235
        $region32: #{tpu_custom_call.1} parent=15 // pred_fallthru
          _
      $region16: #{tpu_custom_call.1} parent=5 // pred_fallthru
        _
      %p237 = scmp.le.s32.totalorder 1, %s19
      %p238 = scmp.lt.s32.totalorder %s19, 3
      %p239 = pnand %p237, %p238
      %p240 = pneg %p239
      // Predicated region
      $region33: #{tpu_custom_call.1} parent=5 // pred_check
        _
      $region34: #{tpu_custom_call.1} parent=5 // pred_check_branch
        %242 = sbr.rel (%p239) target = $region36
      $region35: #{tpu_custom_call.1} parent=5 // pred_region
        %s243 = ssub.s32 %s19, 1
        %s244 = sand.u32 %s32, 1
        %s245 = scalar_lea.sflag [#allocation3], %s244
        %s246 = sand.u32 %s32, 1
        %s247 = smul.addr %s246, 32
        %s248 = scalar_lea.vmem [#allocation2], %s247
        // Predicated region
        $region37: #{tpu_custom_call.1} parent=35 // pred_check
          %p249 = pneg %p45
        $region38: #{tpu_custom_call.1} parent=35 // pred_check_branch
          %251 = sbr.rel (%p249) target = $region40
        $region39: #{tpu_custom_call.1} parent=35 // pred_region
          %252 = dma.done %s245, 512
        $region40: #{tpu_custom_call.1} parent=35 // pred_fallthru
          _
        %s253 = sand.u32 %s24, 1
        %s254 = scalar_lea.sflag [#allocation6], %s253
        %s255 = sand.u32 %s58, 1
        %s256 = smul.addr %s255, 256
        %s257 = scalar_lea.vmem [#allocation5], %s256
        // Predicated region
        $region41: #{tpu_custom_call.1} parent=35 // pred_check
          %p258 = pneg %p71
        $region42: #{tpu_custom_call.1} parent=35 // pred_check_branch
          %260 = sbr.rel (%p258) target = $region44
        $region43: #{tpu_custom_call.1} parent=35 // pred_region
          %261 = dma.done %s254, 4096
        $region44: #{tpu_custom_call.1} parent=35 // pred_fallthru
          _
        %s262 = sand.u32 %s24, 1
        %s263 = scalar_lea.sflag [#allocation6], %s262
        %s264 = sand.u32 %s84, 1
        %s265 = smul.addr %s264, 256
        %s266 = scalar_lea.vmem [#allocation7], %s265
        // Predicated region
        $region45: #{tpu_custom_call.1} parent=35 // pred_check
          %p267 = pneg %p97
        $region46: #{tpu_custom_call.1} parent=35 // pred_check_branch
          %269 = sbr.rel (%p267) target = $region48
        $region47: #{tpu_custom_call.1} parent=35 // pred_region
          %270 = dma.done %s263, 4096
        $region48: #{tpu_custom_call.1} parent=35 // pred_fallthru
          _
        %s271 = sand.u32 %s32, 1
        %s272 = scalar_lea.sflag [#allocation3], %s271
        %s273 = sand.u32 %s32, 1
        %s274 = smul.addr %s273, 32
        %s275 = scalar_lea.vmem [#allocation2], %s274
        %p276 = pneg %p45
        %p277 = pneg %p42
        %s278 = sand.u32 %s24, 1
        %s279 = scalar_lea.sflag [#allocation6], %s278
        %s280 = sand.u32 %s58, 1
        %s281 = smul.addr %s280, 256
        %s282 = scalar_lea.vmem [#allocation5], %s281
        %p283 = pneg %p71
        %p284 = pneg %p68
        %s285 = sand.u32 %s24, 1
        %s286 = scalar_lea.sflag [#allocation6], %s285
        %s287 = sand.u32 %s84, 1
        %s288 = smul.addr %s287, 256
        %s289 = scalar_lea.vmem [#allocation7], %s288
        %p290 = pneg %p97
        %p291 = pneg %p94
        %p292 = scmp.lt.s32.totalorder %s24, 1
        %s293 = scalar_select %p292, %s24, 1
        %s294 = scalar_lea.vmem %s3, %s293
        %p295 = pneg %p123
        %p296 = pneg %p120
        %p297 = pneg %p149
        %p298 = pneg %p146
        %s299 = sand.u32 %s136, 1
        %s300 = scalar_lea.sflag [#allocation4], %s299
        %s301 = sand.u32 %s136, 1
        %s302 = smul.addr %s301, 16
        %s303 = scalar_lea.vmem [#allocation8], %s302
        %p304 = scmp.lt.s32.totalorder %s24, 1
        %s305 = scalar_select %p304, %s24, 1
        %s306 = scalar_lea.vmem %s3, %s305
        %v307 = vld [vmem:[%s248] sm:$0xff]
        %v308 = vld [vmem:[%s248 + $0x8] sm:$0xff]
        %v309 = vld [vmem:[%s248 + $0x10] sm:$0xff]
        %v310 = vld [vmem:[%s248 + $0x18] sm:$0xff]
        %v311 = vld [vmem:[%s257] sm:$0xff]
        %v312 = vld [vmem:[%s257 + $0x8] sm:$0xff]
        %v313 = vld [vmem:[%s257 + $0x10] sm:$0xff]
        %v314 = vld [vmem:[%s257 + $0x18] sm:$0xff]
        %v315 = vld [vmem:[%s257 + $0x20] sm:$0xff]
        %v316 = vld [vmem:[%s257 + $0x28] sm:$0xff]
        %v317 = vld [vmem:[%s257 + $0x30] sm:$0xff]
        %v318 = vld [vmem:[%s257 + $0x38] sm:$0xff]
        %v319 = vld [vmem:[%s257 + $0x40] sm:$0xff]
        %v320 = vld [vmem:[%s257 + $0x48] sm:$0xff]
        %v321 = vld [vmem:[%s257 + $0x50] sm:$0xff]
        %v322 = vld [vmem:[%s257 + $0x58] sm:$0xff]
        %v323 = vld [vmem:[%s257 + $0x60] sm:$0xff]
        %v324 = vld [vmem:[%s257 + $0x68] sm:$0xff]
        %v325 = vld [vmem:[%s257 + $0x70] sm:$0xff]
        %v326 = vld [vmem:[%s257 + $0x78] sm:$0xff]
        %v327 = vld [vmem:[%s257 + $0x80] sm:$0xff]
        %v328 = vld [vmem:[%s257 + $0x88] sm:$0xff]
        %v329 = vld [vmem:[%s257 + $0x90] sm:$0xff]
        %v330 = vld [vmem:[%s257 + $0x98] sm:$0xff]
        %v331 = vld [vmem:[%s257 + $0xa0] sm:$0xff]
        %v332 = vld [vmem:[%s257 + $0xa8] sm:$0xff]
        %v333 = vld [vmem:[%s257 + $0xb0] sm:$0xff]
        %v334 = vld [vmem:[%s257 + $0xb8] sm:$0xff]
        %v335 = vld [vmem:[%s257 + $0xc0] sm:$0xff]
        %v336 = vld [vmem:[%s257 + $0xc8] sm:$0xff]
        %v337 = vld [vmem:[%s257 + $0xd0] sm:$0xff]
        %v338 = vld [vmem:[%s257 + $0xd8] sm:$0xff]
        %v339 = vld [vmem:[%s257 + $0xe0] sm:$0xff]
        %v340 = vld [vmem:[%s257 + $0xe8] sm:$0xff]
        %v341 = vld [vmem:[%s257 + $0xf0] sm:$0xff]
        %v342 = vld [vmem:[%s257 + $0xf8] sm:$0xff]
        %343 = vmatprep.subr.mxu0 0.0
        %344 = vmatpush1.msra.mxu0 %v311
        %345 = vmatprep.subr.mxu0 0.0
        %346 = vmatpush1.msra.mxu0 %v312
        %347 = vmatprep.subr.mxu0 0.0
        %348 = vmatpush1.msra.mxu0 %v313
        %349 = vmatprep.subr.mxu0 0.0
        %350 = vmatpush1.msra.mxu0 %v314
        %351 = vmatprep.subr.mxu0 0.0
        %352 = vmatpush1.msra.mxu0 %v315
        %353 = vmatprep.subr.mxu0 0.0
        %354 = vmatpush1.msra.mxu0 %v316
        %355 = vmatprep.subr.mxu0 0.0
        %356 = vmatpush1.msra.mxu0 %v317
        %357 = vmatprep.subr.mxu0 0.0
        %358 = vmatpush1.msra.mxu0 %v318
        %359 = vmatprep.subr.mxu0 0.0
        %360 = vmatpush1.msra.mxu0 %v319
        %361 = vmatprep.subr.mxu0 0.0
        %362 = vmatpush1.msra.mxu0 %v320
        %363 = vmatprep.subr.mxu0 0.0
        %364 = vmatpush1.msra.mxu0 %v321
        %365 = vmatprep.subr.mxu0 0.0
        %366 = vmatpush1.msra.mxu0 %v322
        %367 = vmatprep.subr.mxu0 0.0
        %368 = vmatpush1.msra.mxu0 %v323
        %369 = vmatprep.subr.mxu0 0.0
        %370 = vmatpush1.msra.mxu0 %v324
        %371 = vmatprep.subr.mxu0 0.0
        %372 = vmatpush1.msra.mxu0 %v325
        %373 = vmatprep.subr.mxu0 0.0
        %374 = vmatpush1.msra.mxu0 %v326
        %375 = vmatprep.subr.mxu0 0.0
        %376 = vmatpush1.msra.mxu0 %v327
        %377 = vmatprep.subr.mxu0 0.0
        %378 = vmatpush1.msra.mxu0 %v328
        %379 = vmatprep.subr.mxu0 0.0
        %380 = vmatpush1.msra.mxu0 %v329
        %381 = vmatprep.subr.mxu0 0.0
        %382 = vmatpush1.msra.mxu0 %v330
        %383 = vmatprep.subr.mxu0 0.0
        %384 = vmatpush1.msra.mxu0 %v331
        %385 = vmatprep.subr.mxu0 0.0
        %386 = vmatpush1.msra.mxu0 %v332
        %387 = vmatprep.subr.mxu0 0.0
        %388 = vmatpush1.msra.mxu0 %v333
        %389 = vmatprep.subr.mxu0 0.0
        %390 = vmatpush1.msra.mxu0 %v334
        %391 = vmatprep.subr.mxu0 0.0
        %392 = vmatpush1.msra.mxu0 %v335
        %393 = vmatprep.subr.mxu0 0.0
        %394 = vmatpush1.msra.mxu0 %v336
        %395 = vmatprep.subr.mxu0 0.0
        %396 = vmatpush1.msra.mxu0 %v337
        %397 = vmatprep.subr.mxu0 0.0
        %398 = vmatpush1.msra.mxu0 %v338
        %399 = vmatprep.subr.mxu0 0.0
        %400 = vmatpush1.msra.mxu0 %v339
        %401 = vmatprep.subr.mxu0 0.0
        %402 = vmatpush1.msra.mxu0 %v340
        %403 = vmatprep.subr.mxu0 0.0
        %404 = vmatpush1.msra.mxu0 %v341
        %405 = vmatprep.subr.mxu0 0.0
        %406 = vmatpush1.msra.mxu0 %v342
        %407 = vmatprep.mubr.f32.mxu0 %v308
        %408 = vmatmul.mubr.f32.gmra.mrb[0].mxu0 %v307
        %v409 = vpop.f32.mrb[0].mxu0
        %v410 = vadd.f32 0.0, %v409
        %v411 = vpop.f32.mrb[0].mxu0
        %412 = vmatprep.mubr.f32.mxu0 %v310
        %413 = vmatmul.mubr.f32.gmra.mrb[0].mxu0 %v309
        %v414 = vpop.f32.mrb[0].mxu0
        %v415 = vadd.f32 0.0, %v414
        %v416 = vpop.f32.mrb[0].mxu0
        %417 = vdwg.mxu0
        %v418 = vld [vmem:[%s266] sm:$0xff]
        %v419 = vld [vmem:[%s266 + $0x10] sm:$0xff]
        %v420 = vld [vmem:[%s266 + $0x20] sm:$0xff]
        %v421 = vld [vmem:[%s266 + $0x30] sm:$0xff]
        %v422 = vld [vmem:[%s266 + $0x40] sm:$0xff]
        %v423 = vld [vmem:[%s266 + $0x50] sm:$0xff]
        %v424 = vld [vmem:[%s266 + $0x60] sm:$0xff]
        %v425 = vld [vmem:[%s266 + $0x70] sm:$0xff]
        %v426 = vld [vmem:[%s266 + $0x80] sm:$0xff]
        %v427 = vld [vmem:[%s266 + $0x90] sm:$0xff]
        %v428 = vld [vmem:[%s266 + $0xa0] sm:$0xff]
        %v429 = vld [vmem:[%s266 + $0xb0] sm:$0xff]
        %v430 = vld [vmem:[%s266 + $0xc0] sm:$0xff]
        %v431 = vld [vmem:[%s266 + $0xd0] sm:$0xff]
        %v432 = vld [vmem:[%s266 + $0xe0] sm:$0xff]
        %v433 = vld [vmem:[%s266 + $0xf0] sm:$0xff]
        %v434 = vld [vmem:[%s306] sm:$0x1]
        %v436 = vlaneseq
        %v437 = vshrl.u32 %v436, 7
        %v438 = vsub.s32 0, %v437
        %v439 = vrot.slane %v434, %v438
        %441 = vmatprep.subr.mxu0 0.0
        %442 = vmatpush1.msra.mxu0 %v418
        %443 = vmatprep.subr.mxu0 0.0
        %444 = vmatpush1.msra.mxu0 %v419
        %445 = vmatprep.subr.mxu0 0.0
        %446 = vmatpush1.msra.mxu0 %v420
        %447 = vmatprep.subr.mxu0 0.0
        %448 = vmatpush1.msra.mxu0 %v421
        %449 = vmatprep.subr.mxu0 0.0
        %450 = vmatpush1.msra.mxu0 %v422
        %451 = vmatprep.subr.mxu0 0.0
        %452 = vmatpush1.msra.mxu0 %v423
        %453 = vmatprep.subr.mxu0 0.0
        %454 = vmatpush1.msra.mxu0 %v424
        %455 = vmatprep.subr.mxu0 0.0
        %456 = vmatpush1.msra.mxu0 %v425
        %457 = vmatprep.subr.mxu0 0.0
        %458 = vmatpush1.msra.mxu0 %v426
        %459 = vmatprep.subr.mxu0 0.0
        %460 = vmatpush1.msra.mxu0 %v427
        %461 = vmatprep.subr.mxu0 0.0
        %462 = vmatpush1.msra.mxu0 %v428
        %463 = vmatprep.subr.mxu0 0.0
        %464 = vmatpush1.msra.mxu0 %v429
        %465 = vmatprep.subr.mxu0 0.0
        %466 = vmatpush1.msra.mxu0 %v430
        %467 = vmatprep.subr.mxu0 0.0
        %468 = vmatpush1.msra.mxu0 %v431
        %469 = vmatprep.subr.mxu0 0.0
        %470 = vmatpush1.msra.mxu0 %v432
        %471 = vmatprep.subr.mxu0 0.0
        %472 = vmatpush1.msra.mxu0 %v433
        %473 = vmatprep.subr.mxu0 0.0
        %474 = vmatpush1.msra.mxu0 0.0
        %475 = vmatprep.subr.mxu0 0.0
        %476 = vmatpush1.msra.mxu0 0.0
        %477 = vmatprep.subr.mxu0 0.0
        %478 = vmatpush1.msra.mxu0 0.0
        %479 = vmatprep.subr.mxu0 0.0
        %480 = vmatpush1.msra.mxu0 0.0
        %481 = vmatprep.subr.mxu0 0.0
        %482 = vmatpush1.msra.mxu0 0.0
        %483 = vmatprep.subr.mxu0 0.0
        %484 = vmatpush1.msra.mxu0 0.0
        %485 = vmatprep.subr.mxu0 0.0
        %486 = vmatpush1.msra.mxu0 0.0
        %487 = vmatprep.subr.mxu0 0.0
        %488 = vmatpush1.msra.mxu0 0.0
        %489 = vmatprep.subr.mxu0 0.0
        %490 = vmatpush1.msra.mxu0 0.0
        %491 = vmatprep.subr.mxu0 0.0
        %492 = vmatpush1.msra.mxu0 0.0
        %493 = vmatprep.subr.mxu0 0.0
        %494 = vmatpush1.msra.mxu0 0.0
        %495 = vmatprep.subr.mxu0 0.0
        %496 = vmatpush1.msra.mxu0 0.0
        %497 = vmatprep.subr.mxu0 0.0
        %498 = vmatpush1.msra.mxu0 0.0
        %499 = vmatprep.subr.mxu0 0.0
        %500 = vmatpush1.msra.mxu0 0.0
        %501 = vmatprep.subr.mxu0 0.0
        %502 = vmatpush1.msra.mxu0 0.0
        %503 = vmatprep.subr.mxu0 0.0
        %504 = vmatpush1.msra.mxu0 0.0
        %505 = vmatprep.mubr.f32.mxu0 0.0
        %506 = vmatmul.mubr.f32.gmra.mrb[0].mxu0 %v410
        %v507 = vpop.f32.mrb[0].mxu0
        %v508 = vadd.f32 %v439, %v507
        %v509 = vpop.f32.mrb[0].mxu0
        %510 = vmatprep.mubr.f32.mxu0 0.0
        %511 = vmatmul.mubr.f32.gmra.mrb[0].mxu0 %v415
        %v512 = vpop.f32.mrb[0].mxu0
        %v513 = vadd.f32 %v439, %v512
        %v514 = vpop.f32.mrb[0].mxu0
        %515 = vdwg.mxu0
        %v516 = vmul.f32 %v508, 0.01
        %v517 = vmul.f32 %v513, 0.01
        %v518 = vmax.f32 %v508, %v516
        %v519 = vmax.f32 %v513, %v517
        %v520 = vld [vmem:[%s266 + $0x8] sm:$0xff]
        %v521 = vld [vmem:[%s266 + $0x18] sm:$0xff]
        %v522 = vld [vmem:[%s266 + $0x28] sm:$0xff]
        %v523 = vld [vmem:[%s266 + $0x38] sm:$0xff]
        %v524 = vld [vmem:[%s266 + $0x48] sm:$0xff]
        %v525 = vld [vmem:[%s266 + $0x58] sm:$0xff]
        %v526 = vld [vmem:[%s266 + $0x68] sm:$0xff]
        %v527 = vld [vmem:[%s266 + $0x78] sm:$0xff]
        %v528 = vld [vmem:[%s266 + $0x88] sm:$0xff]
        %v529 = vld [vmem:[%s266 + $0x98] sm:$0xff]
        %v530 = vld [vmem:[%s266 + $0xa8] sm:$0xff]
        %v531 = vld [vmem:[%s266 + $0xb8] sm:$0xff]
        %v532 = vld [vmem:[%s266 + $0xc8] sm:$0xff]
        %v533 = vld [vmem:[%s266 + $0xd8] sm:$0xff]
        %v534 = vld [vmem:[%s266 + $0xe8] sm:$0xff]
        %v535 = vld [vmem:[%s266 + $0xf8] sm:$0xff]
        %536 = vmatprep.subr.mxu0 0.0
        %537 = vmatpush1.msra.mxu0 %v520
        %538 = vmatprep.subr.mxu0 0.0
        %539 = vmatpush1.msra.mxu0 %v521
        %540 = vmatprep.subr.mxu0 0.0
        %541 = vmatpush1.msra.mxu0 %v522
        %542 = vmatprep.subr.mxu0 0.0
        %543 = vmatpush1.msra.mxu0 %v523
        %544 = vmatprep.subr.mxu0 0.0
        %545 = vmatpush1.msra.mxu0 %v524
        %546 = vmatprep.subr.mxu0 0.0
        %547 = vmatpush1.msra.mxu0 %v525
        %548 = vmatprep.subr.mxu0 0.0
        %549 = vmatpush1.msra.mxu0 %v526
        %550 = vmatprep.subr.mxu0 0.0
        %551 = vmatpush1.msra.mxu0 %v527
        %552 = vmatprep.subr.mxu0 0.0
        %553 = vmatpush1.msra.mxu0 %v528
        %554 = vmatprep.subr.mxu0 0.0
        %555 = vmatpush1.msra.mxu0 %v529
        %556 = vmatprep.subr.mxu0 0.0
        %557 = vmatpush1.msra.mxu0 %v530
        %558 = vmatprep.subr.mxu0 0.0
        %559 = vmatpush1.msra.mxu0 %v531
        %560 = vmatprep.subr.mxu0 0.0
        %561 = vmatpush1.msra.mxu0 %v532
        %562 = vmatprep.subr.mxu0 0.0
        %563 = vmatpush1.msra.mxu0 %v533
        %564 = vmatprep.subr.mxu0 0.0
        %565 = vmatpush1.msra.mxu0 %v534
        %566 = vmatprep.subr.mxu0 0.0
        %567 = vmatpush1.msra.mxu0 %v535
        %568 = vmatprep.subr.mxu0 0.0
        %569 = vmatpush1.msra.mxu0 0.0
        %570 = vmatprep.subr.mxu0 0.0
        %571 = vmatpush1.msra.mxu0 0.0
        %572 = vmatprep.subr.mxu0 0.0
        %573 = vmatpush1.msra.mxu0 0.0
        %574 = vmatprep.subr.mxu0 0.0
        %575 = vmatpush1.msra.mxu0 0.0
        %576 = vmatprep.subr.mxu0 0.0
        %577 = vmatpush1.msra.mxu0 0.0
        %578 = vmatprep.subr.mxu0 0.0
        %579 = vmatpush1.msra.mxu0 0.0
        %580 = vmatprep.subr.mxu0 0.0
        %581 = vmatpush1.msra.mxu0 0.0
        %582 = vmatprep.subr.mxu0 0.0
        %583 = vmatpush1.msra.mxu0 0.0
        %584 = vmatprep.subr.mxu0 0.0
        %585 = vmatpush1.msra.mxu0 0.0
        %586 = vmatprep.subr.mxu0 0.0
        %587 = vmatpush1.msra.mxu0 0.0
        %588 = vmatprep.subr.mxu0 0.0
        %589 = vmatpush1.msra.mxu0 0.0
        %590 = vmatprep.subr.mxu0 0.0
        %591 = vmatpush1.msra.mxu0 0.0
        %592 = vmatprep.subr.mxu0 0.0
        %593 = vmatpush1.msra.mxu0 0.0
        %594 = vmatprep.subr.mxu0 0.0
        %595 = vmatpush1.msra.mxu0 0.0
        %596 = vmatprep.subr.mxu0 0.0
        %597 = vmatpush1.msra.mxu0 0.0
        %598 = vmatprep.subr.mxu0 0.0
        %599 = vmatpush1.msra.mxu0 0.0
        %600 = vmatprep.mubr.f32.mxu0 0.0
        %601 = vmatmul.mubr.f32.gmra.mrb[0].mxu0 %v518
        %v602 = vpop.f32.mrb[0].mxu0
        %v603 = vadd.f32 0.0, %v602
        %v604 = vpop.f32.mrb[0].mxu0
        %605 = vmatprep.mubr.f32.mxu0 0.0
        %606 = vmatmul.mubr.f32.gmra.mrb[0].mxu0 %v519
        %v607 = vpop.f32.mrb[0].mxu0
        %v608 = vadd.f32 0.0, %v607
        %v609 = vpop.f32.mrb[0].mxu0
        %610 = vdwg.mxu0
        %611 = vst [vmem:[%s303] sm:$0xff] %v603
        %612 = vst [vmem:[%s303 + $0x8] sm:$0xff] %v608
        %s613 = sand.u32 %s136, 1
        %s614 = scalar_lea.sflag [#allocation4], %s613
        %s615 = sand.u32 %s136, 1
        %s616 = smul.addr %s615, 16
        %s617 = scalar_lea.vmem [#allocation8], %s616
        // Predicated region
        $region49: #{tpu_custom_call.1} parent=35 // pred_check
          %p618 = pneg %p146
        $region50: #{tpu_custom_call.1} parent=35 // pred_check_branch
          %620 = sbr.rel (%p618) target = $region52
        $region51: #{tpu_custom_call.1} parent=35 // pred_region
          %s622 = ssub.s32 256, 256
          %623 = vsyncadd %s614, %s622
          %s624 = smul.addr %s24, 2
          %s625 = smul.addr %s624, 128
          %s626 = scalar_lea.hbm %s4, %s625
          %s627 = sshll.u32 %s617, 4
          %s628 = int_to_ptr.vmem [resolvable:$true] %s627
          %633 = dma.vmem_to_hbm [thread:$0]  %s628, 256, %s626, %s614, 128, 128, 8
        $region52: #{tpu_custom_call.1} parent=35 // pred_fallthru
          _
      $region36: #{tpu_custom_call.1} parent=5 // pred_fallthru
        _
      %p634 = scmp.le.s32.totalorder 2, %s19
      // Predicated region
      $region53: #{tpu_custom_call.1} parent=5 // pred_check
        %p635 = pneg %p634
      $region54: #{tpu_custom_call.1} parent=5 // pred_check_branch
        %637 = sbr.rel (%p635) target = $region56
      $region55: #{tpu_custom_call.1} parent=5 // pred_region
        %s638 = ssub.s32 %s19, 2
        // Predicated region
        $region57: #{tpu_custom_call.1} parent=55 // pred_check
          %p639 = pneg %p152
        $region58: #{tpu_custom_call.1} parent=55 // pred_check_branch
          %641 = sbr.rel (%p639) target = $region60
        $region59: #{tpu_custom_call.1} parent=55 // pred_region
          %s642 = sand.u32 %s137, 1
          %s643 = scalar_lea.sflag [#allocation4], %s642
          %s644 = sand.u32 %s137, 1
          %s645 = smul.addr %s644, 16
          %s646 = scalar_lea.vmem [#allocation8], %s645
          %647 = dma.done %s643, 256
        $region60: #{tpu_custom_call.1} parent=55 // pred_fallthru
          _
      $region56: #{tpu_custom_call.1} parent=5 // pred_fallthru
        _
    $region6: #{tpu_custom_call.1} parent=1 // loop_footer
      %s23 = sadd.s32 1, %s19
    $region7: #{tpu_custom_call.1} parent=1 // loop_footer_branch
      %18 = sbr.rel target = $region3
    $region8: #{tpu_custom_call.1} parent=1 // loop_exit
      _
    %648 = vsyncpa [#allocation3], 1
    %s649 = scalar_lea.sflag [#allocation3], 1
    %650 = vsyncpa %s649, 1
    %651 = vsyncpa [#allocation6], 1
    %s652 = scalar_lea.sflag [#allocation6], 1
    %653 = vsyncpa %s652, 1
    %654 = vsyncpa [#allocation4], 1
    %s655 = scalar_lea.sflag [#allocation4], 1
    %656 = vsyncpa %s655, 1

</llo_original>
